<compile_context>
chip_gen: v7x
topology: tpu7x:2x2x1
jax: 0.10.0
libtpu: 0.0.40
codegen_flags: <defaults>
</compile_context>

<pallas_src>
import functools

import jax
import jax.numpy as jnp
from jax.experimental import pallas as pl
from jax.experimental.pallas import tpu as pltpu


# ----------------------------- activation helper -----------------------------

def _apply_act(x, name):
    if name == "relu":
        return jnp.maximum(x, 0.0)
    if name == "leaky":
        return jnp.where(x >= 0.0, x, 0.01 * x)     # PyTorch LeakyReLU default slope
    if name == "sigmoid":
        return jax.nn.sigmoid(x)
    if name == "tanh":
        return jnp.tanh(x)
    raise ValueError(f"Unsupported activation function: {name}")


# ------------------------------- fused MLP kernel ------------------------------

def _fused_mlp_kernel(x_ref,
                      w1_ref, b1_ref, w2_ref, b2_ref, w3_ref, b3_ref,
                      w4_ref, b4_ref, w5_ref, b5_ref, w6_ref, b6_ref,
                      o_ref, *, act):
    """All six Linear+act layers chained in VMEM; only x and the (tm,1) output
    tile touch HBM."""
    h = x_ref[...]
    h = _apply_act(jnp.dot(h, w1_ref[...], preferred_element_type=jnp.float32)
                   + b1_ref[...], act)
    h = _apply_act(jnp.dot(h, w2_ref[...], preferred_element_type=jnp.float32)
                   + b2_ref[...], act)
    h = _apply_act(jnp.dot(h, w3_ref[...], preferred_element_type=jnp.float32)
                   + b3_ref[...], act)
    h = _apply_act(jnp.dot(h, w4_ref[...], preferred_element_type=jnp.float32)
                   + b4_ref[...], act)
    h = _apply_act(jnp.dot(h, w5_ref[...], preferred_element_type=jnp.float32)
                   + b5_ref[...], act)
    o_ref[...] = (jnp.dot(h, w6_ref[...], preferred_element_type=jnp.float32)
                  + b6_ref[...]).astype(o_ref.dtype)


def _row_tile(M):
    """Pick a row tile: full M when small/odd (block == full array is always
    legal), otherwise a multiple-of-8 tile so larger batches get a parallel
    grid axis (both TCs on v7x) and pipelining."""
    if M <= 8 or M % 8 != 0:
        return M
    tm = min(M, 256)
    while M % tm:
        tm //= 2
    return max(tm, 8)


def simple_disc_forward(params, x, *, act):
    """x: (M, features) float32 -> (M, 1) float32."""
    M, F = x.shape
    (w1, b1), (w2, b2), (w3, b3), (w4, b4), (w5, b5), (w6, b6) = params

    tm = _row_tile(M)
    grid = (M // tm,)

    def full_spec(shape):
        nd = len(shape)
        return pl.BlockSpec(shape, lambda i, _nd=nd: (0,) * _nd)

    in_specs = [pl.BlockSpec((tm, F), lambda i: (i, 0))]
    flat_wb = []
    for w, b in ((w1, b1), (w2, b2), (w3, b3), (w4, b4), (w5, b5), (w6, b6)):
        b2d = b.reshape(1, b.shape[0])           # biases as (1, fo) rows
        in_specs.append(full_spec(w.shape))
        in_specs.append(full_spec(b2d.shape))
        flat_wb.extend([w, b2d])

    out_dim = w6.shape[1]
    return pl.pallas_call(
        functools.partial(_fused_mlp_kernel, act=act),
        out_shape=jax.ShapeDtypeStruct((M, out_dim), jnp.float32),
        grid=grid,
        in_specs=in_specs,
        out_specs=pl.BlockSpec((tm, out_dim), lambda i: (i, 0)),
        compiler_params=pltpu.CompilerParams(
            dimension_semantics=("parallel",)),
    )(x, *flat_wb)


# ------------------------------ parameter setup ------------------------------

def make_params(key, features):
    """PyTorch nn.Linear-style init: U(-1/sqrt(fan_in), 1/sqrt(fan_in))."""
    dims = [features, 256, 128, 64, 32, 16, 1]
    params = []
    for fi, fo in zip(dims[:-1], dims[1:]):
        key, kw, kb = jax.random.split(key, 3)
        bound = 1.0 / float(fi) ** 0.5
        w = jax.random.uniform(kw, (fi, fo), jnp.float32, -bound, bound)
        b = jax.random.uniform(kb, (fo,), jnp.float32, -bound, bound)
        params.append((w, b))
    return params


def reference_forward(params, x, act):
    h = x
    for idx, (w, b) in enumerate(params):
        h = h @ w + b
        if idx < len(params) - 1:
            h = _apply_act(h, act)
    return h


# ----------------------------------- main -------------------------------------

if __name__ == "__main__":
    act = "relu"
    batch = 2
    vertexes = 8
    m_dim = 4       # node feature dim
    b_dim = 4       # edge (bond) feature dim
    features = vertexes * m_dim + vertexes * vertexes * b_dim   # 8*4 + 64*4 = 288

    key = jax.random.PRNGKey(0)
    k_p, k_x = jax.random.split(key)

    params = make_params(k_p, features)
    x = jax.random.normal(k_x, (batch, features), jnp.float32)

    fwd = jax.jit(functools.partial(simple_disc_forward, act=act))
    pred = fwd(params, x)
    pred = jax.block_until_ready(pred)

    assert pred.shape == (batch, 1), pred.shape
    assert bool(jnp.all(jnp.isfinite(pred)))

    # Self-check against a pure-JAX reference of the same MLP.
    ref = reference_forward(params, x, act)
    assert bool(jnp.allclose(pred, ref, rtol=1e-5, atol=1e-5)), (pred, ref)

    print("KERNEL_OK")
</pallas_src>

<mosaic_0001>
module attributes {stable_mosaic.version = 11 : i64} {
  func.func @_fused_mlp_kernel(%arg0: i32, %arg1: memref<2x288xf32, #tpu.memory_space<vmem>>, %arg2: memref<288x256xf32, #tpu.memory_space<vmem>>, %arg3: memref<1x256xf32, #tpu.memory_space<vmem>>, %arg4: memref<256x128xf32, #tpu.memory_space<vmem>>, %arg5: memref<1x128xf32, #tpu.memory_space<vmem>>, %arg6: memref<128x64xf32, #tpu.memory_space<vmem>>, %arg7: memref<1x64xf32, #tpu.memory_space<vmem>>, %arg8: memref<64x32xf32, #tpu.memory_space<vmem>>, %arg9: memref<1x32xf32, #tpu.memory_space<vmem>>, %arg10: memref<32x16xf32, #tpu.memory_space<vmem>>, %arg11: memref<1x16xf32, #tpu.memory_space<vmem>>, %arg12: memref<16x1xf32, #tpu.memory_space<vmem>>, %arg13: memref<1x1xf32, #tpu.memory_space<vmem>>, %arg14: memref<2x1xf32, #tpu.memory_space<vmem>>) attributes {dimension_semantics = [#tpu.dimension_semantics<parallel>], iteration_bounds = array<i64: 1>, scalar_prefetch = 0 : i64, scratch_operands = 0 : i64, tpu.core_type = #tpu.core_type<tc>, window_params = [{transform_indices = @transform_0, window_bounds = array<i64: 2, 288>}, {pipeline_mode = #tpu.pipeline_mode<synchronous>, transform_indices = @transform_1, window_bounds = array<i64: 288, 256>}, {pipeline_mode = #tpu.pipeline_mode<synchronous>, transform_indices = @transform_2, window_bounds = array<i64: 1, 256>}, {pipeline_mode = #tpu.pipeline_mode<synchronous>, transform_indices = @transform_3, window_bounds = array<i64: 256, 128>}, {pipeline_mode = #tpu.pipeline_mode<synchronous>, transform_indices = @transform_4, window_bounds = array<i64: 1, 128>}, {pipeline_mode = #tpu.pipeline_mode<synchronous>, transform_indices = @transform_5, window_bounds = array<i64: 128, 64>}, {pipeline_mode = #tpu.pipeline_mode<synchronous>, transform_indices = @transform_6, window_bounds = array<i64: 1, 64>}, {pipeline_mode = #tpu.pipeline_mode<synchronous>, transform_indices = @transform_7, window_bounds = array<i64: 64, 32>}, {pipeline_mode = #tpu.pipeline_mode<synchronous>, transform_indices = @transform_8, window_bounds = array<i64: 1, 32>}, {pipeline_mode = #tpu.pipeline_mode<synchronous>, transform_indices = @transform_9, window_bounds = array<i64: 32, 16>}, {pipeline_mode = #tpu.pipeline_mode<synchronous>, transform_indices = @transform_10, window_bounds = array<i64: 1, 16>}, {pipeline_mode = #tpu.pipeline_mode<synchronous>, transform_indices = @transform_11, window_bounds = array<i64: 16, 1>}, {pipeline_mode = #tpu.pipeline_mode<synchronous>, transform_indices = @transform_12, window_bounds = array<i64: 1, 1>}, {transform_indices = @transform_13, window_bounds = array<i64: 2, 1>}]} {
    %c0 = arith.constant 0 : index
    %c0_0 = arith.constant 0 : index
    %0 = vector.load %arg1[%c0, %c0_0] : memref<2x288xf32, #tpu.memory_space<vmem>>, vector<2x288xf32>
    %c0_1 = arith.constant 0 : index
    %c0_2 = arith.constant 0 : index
    %1 = vector.load %arg2[%c0_1, %c0_2] : memref<288x256xf32, #tpu.memory_space<vmem>>, vector<288x256xf32>
    %cst = arith.constant dense<0.000000e+00> : vector<2x256xf32>
    %2 = tpu.matmul %0, %1, %cst {dimension_numbers = #tpu.dot_dimension_numbers<[1], [0], [0], [1], [0, 0, 1, 1], [], []>} : vector<2x288xf32>, vector<288x256xf32>, vector<2x256xf32> -> vector<2x256xf32>
    %c0_3 = arith.constant 0 : index
    %c0_4 = arith.constant 0 : index
    %3 = vector.load %arg3[%c0_3, %c0_4] : memref<1x256xf32, #tpu.memory_space<vmem>>, vector<1x256xf32>
    %4 = vector.broadcast %3 : vector<1x256xf32> to vector<2x256xf32>
    %5 = arith.addf %2, %4 : vector<2x256xf32>
    %cst_5 = arith.constant 0.000000e+00 : f32
    %6 = vector.broadcast %cst_5 : f32 to vector<2x256xf32>
    %7 = arith.maximumf %5, %6 : vector<2x256xf32>
    %c0_6 = arith.constant 0 : index
    %c0_7 = arith.constant 0 : index
    %8 = vector.load %arg4[%c0_6, %c0_7] : memref<256x128xf32, #tpu.memory_space<vmem>>, vector<256x128xf32>
    %cst_8 = arith.constant dense<0.000000e+00> : vector<2x128xf32>
    %9 = tpu.matmul %7, %8, %cst_8 {dimension_numbers = #tpu.dot_dimension_numbers<[1], [0], [0], [1], [0, 0, 1, 1], [], []>} : vector<2x256xf32>, vector<256x128xf32>, vector<2x128xf32> -> vector<2x128xf32>
    %c0_9 = arith.constant 0 : index
    %c0_10 = arith.constant 0 : index
    %10 = vector.load %arg5[%c0_9, %c0_10] : memref<1x128xf32, #tpu.memory_space<vmem>>, vector<1x128xf32>
    %11 = vector.broadcast %10 : vector<1x128xf32> to vector<2x128xf32>
    %12 = arith.addf %9, %11 : vector<2x128xf32>
    %cst_11 = arith.constant 0.000000e+00 : f32
    %13 = vector.broadcast %cst_11 : f32 to vector<2x128xf32>
    %14 = arith.maximumf %12, %13 : vector<2x128xf32>
    %c0_12 = arith.constant 0 : index
    %c0_13 = arith.constant 0 : index
    %15 = vector.load %arg6[%c0_12, %c0_13] : memref<128x64xf32, #tpu.memory_space<vmem>>, vector<128x64xf32>
    %cst_14 = arith.constant dense<0.000000e+00> : vector<2x64xf32>
    %16 = tpu.matmul %14, %15, %cst_14 {dimension_numbers = #tpu.dot_dimension_numbers<[1], [0], [0], [1], [0, 0, 1, 1], [], []>} : vector<2x128xf32>, vector<128x64xf32>, vector<2x64xf32> -> vector<2x64xf32>
    %c0_15 = arith.constant 0 : index
    %c0_16 = arith.constant 0 : index
    %17 = vector.load %arg7[%c0_15, %c0_16] : memref<1x64xf32, #tpu.memory_space<vmem>>, vector<1x64xf32>
    %18 = vector.broadcast %17 : vector<1x64xf32> to vector<2x64xf32>
    %19 = arith.addf %16, %18 : vector<2x64xf32>
    %cst_17 = arith.constant 0.000000e+00 : f32
    %20 = vector.broadcast %cst_17 : f32 to vector<2x64xf32>
    %21 = arith.maximumf %19, %20 : vector<2x64xf32>
    %c0_18 = arith.constant 0 : index
    %c0_19 = arith.constant 0 : index
    %22 = vector.load %arg8[%c0_18, %c0_19] : memref<64x32xf32, #tpu.memory_space<vmem>>, vector<64x32xf32>
    %cst_20 = arith.constant dense<0.000000e+00> : vector<2x32xf32>
    %23 = tpu.matmul %21, %22, %cst_20 {dimension_numbers = #tpu.dot_dimension_numbers<[1], [0], [0], [1], [0, 0, 1, 1], [], []>} : vector<2x64xf32>, vector<64x32xf32>, vector<2x32xf32> -> vector<2x32xf32>
    %c0_21 = arith.constant 0 : index
    %c0_22 = arith.constant 0 : index
    %24 = vector.load %arg9[%c0_21, %c0_22] : memref<1x32xf32, #tpu.memory_space<vmem>>, vector<1x32xf32>
    %25 = vector.broadcast %24 : vector<1x32xf32> to vector<2x32xf32>
    %26 = arith.addf %23, %25 : vector<2x32xf32>
    %cst_23 = arith.constant 0.000000e+00 : f32
    %27 = vector.broadcast %cst_23 : f32 to vector<2x32xf32>
    %28 = arith.maximumf %26, %27 : vector<2x32xf32>
    %c0_24 = arith.constant 0 : index
    %c0_25 = arith.constant 0 : index
    %29 = vector.load %arg10[%c0_24, %c0_25] : memref<32x16xf32, #tpu.memory_space<vmem>>, vector<32x16xf32>
    %cst_26 = arith.constant dense<0.000000e+00> : vector<2x16xf32>
    %30 = tpu.matmul %28, %29, %cst_26 {dimension_numbers = #tpu.dot_dimension_numbers<[1], [0], [0], [1], [0, 0, 1, 1], [], []>} : vector<2x32xf32>, vector<32x16xf32>, vector<2x16xf32> -> vector<2x16xf32>
    %c0_27 = arith.constant 0 : index
    %c0_28 = arith.constant 0 : index
    %31 = vector.load %arg11[%c0_27, %c0_28] : memref<1x16xf32, #tpu.memory_space<vmem>>, vector<1x16xf32>
    %32 = vector.broadcast %31 : vector<1x16xf32> to vector<2x16xf32>
    %33 = arith.addf %30, %32 : vector<2x16xf32>
    %cst_29 = arith.constant 0.000000e+00 : f32
    %34 = vector.broadcast %cst_29 : f32 to vector<2x16xf32>
    %35 = arith.maximumf %33, %34 : vector<2x16xf32>
    %c0_30 = arith.constant 0 : index
    %c0_31 = arith.constant 0 : index
    %36 = vector.load %arg12[%c0_30, %c0_31] : memref<16x1xf32, #tpu.memory_space<vmem>>, vector<16x1xf32>
    %cst_32 = arith.constant dense<0.000000e+00> : vector<2x1xf32>
    %37 = tpu.matmul %35, %36, %cst_32 {dimension_numbers = #tpu.dot_dimension_numbers<[1], [0], [0], [1], [0, 0, 1, 1], [], []>} : vector<2x16xf32>, vector<16x1xf32>, vector<2x1xf32> -> vector<2x1xf32>
    %c0_33 = arith.constant 0 : index
    %c0_34 = arith.constant 0 : index
    %38 = vector.load %arg13[%c0_33, %c0_34] : memref<1x1xf32, #tpu.memory_space<vmem>>, vector<1x1xf32>
    %39 = vector.broadcast %38 : vector<1x1xf32> to vector<2x1xf32>
    %40 = arith.addf %37, %39 : vector<2x1xf32>
    %c0_35 = arith.constant 0 : index
    %c0_36 = arith.constant 0 : index
    %41 = vector.load %arg14[%c0_35, %c0_36] : memref<2x1xf32, #tpu.memory_space<vmem>>, vector<2x1xf32>
    tpu.vector_store %arg14[%c0_35, %c0_36], %40 {strides = array<i32>} : memref<2x1xf32, #tpu.memory_space<vmem>>, vector<2x1xf32>,
    return
  }
  func.func @transform_0(%arg0: i32) -> (i32, i32) {
    %c0_i32 = arith.constant 0 : i32
    %c0_i32_0 = arith.constant 0 : i32
    return %arg0, %c0_i32 : i32, i32
  }
  func.func @transform_1(%arg0: i32) -> (i32, i32) {
    %c0_i32 = arith.constant 0 : i32
    %c0_i32_0 = arith.constant 0 : i32
    %c0_i32_1 = arith.constant 0 : i32
    return %c0_i32, %c0_i32_0 : i32, i32
  }
  func.func @transform_2(%arg0: i32) -> (i32, i32) {
    %c0_i32 = arith.constant 0 : i32
    %c0_i32_0 = arith.constant 0 : i32
    %c0_i32_1 = arith.constant 0 : i32
    return %c0_i32, %c0_i32_0 : i32, i32
  }
  func.func @transform_3(%arg0: i32) -> (i32, i32) {
    %c0_i32 = arith.constant 0 : i32
    %c0_i32_0 = arith.constant 0 : i32
    %c0_i32_1 = arith.constant 0 : i32
    return %c0_i32, %c0_i32_0 : i32, i32
  }
  func.func @transform_4(%arg0: i32) -> (i32, i32) {
    %c0_i32 = arith.constant 0 : i32
    %c0_i32_0 = arith.constant 0 : i32
    %c0_i32_1 = arith.constant 0 : i32
    return %c0_i32, %c0_i32_0 : i32, i32
  }
  func.func @transform_5(%arg0: i32) -> (i32, i32) {
    %c0_i32 = arith.constant 0 : i32
    %c0_i32_0 = arith.constant 0 : i32
    %c0_i32_1 = arith.constant 0 : i32
    return %c0_i32, %c0_i32_0 : i32, i32
  }
  func.func @transform_6(%arg0: i32) -> (i32, i32) {
    %c0_i32 = arith.constant 0 : i32
    %c0_i32_0 = arith.constant 0 : i32
    %c0_i32_1 = arith.constant 0 : i32
    return %c0_i32, %c0_i32_0 : i32, i32
  }
  func.func @transform_7(%arg0: i32) -> (i32, i32) {
    %c0_i32 = arith.constant 0 : i32
    %c0_i32_0 = arith.constant 0 : i32
    %c0_i32_1 = arith.constant 0 : i32
    return %c0_i32, %c0_i32_0 : i32, i32
  }
  func.func @transform_8(%arg0: i32) -> (i32, i32) {
    %c0_i32 = arith.constant 0 : i32
    %c0_i32_0 = arith.constant 0 : i32
    %c0_i32_1 = arith.constant 0 : i32
    return %c0_i32, %c0_i32_0 : i32, i32
  }
  func.func @transform_9(%arg0: i32) -> (i32, i32) {
    %c0_i32 = arith.constant 0 : i32
    %c0_i32_0 = arith.constant 0 : i32
    %c0_i32_1 = arith.constant 0 : i32
    return %c0_i32, %c0_i32_0 : i32, i32
  }
  func.func @transform_10(%arg0: i32) -> (i32, i32) {
    %c0_i32 = arith.constant 0 : i32
    %c0_i32_0 = arith.constant 0 : i32
    %c0_i32_1 = arith.constant 0 : i32
    return %c0_i32, %c0_i32_0 : i32, i32
  }
  func.func @transform_11(%arg0: i32) -> (i32, i32) {
    %c0_i32 = arith.constant 0 : i32
    %c0_i32_0 = arith.constant 0 : i32
    %c0_i32_1 = arith.constant 0 : i32
    return %c0_i32, %c0_i32_0 : i32, i32
  }
  func.func @transform_12(%arg0: i32) -> (i32, i32) {
    %c0_i32 = arith.constant 0 : i32
    %c0_i32_0 = arith.constant 0 : i32
    %c0_i32_1 = arith.constant 0 : i32
    return %c0_i32, %c0_i32_0 : i32, i32
  }
  func.func @transform_13(%arg0: i32) -> (i32, i32) {
    %c0_i32 = arith.constant 0 : i32
    %c0_i32_0 = arith.constant 0 : i32
    return %arg0, %c0_i32 : i32, i32
  }
}

</mosaic_0001>

<llo_original>
// kernel: simple_disc_forward.1
$region0: #{simple_disc_forward.1}
  #allocation0 [shape = 'u32[]', space=smem, size = 0x4, offset = 0x4, fixed_abs, tag = 'smem constant byte address 0x4 - core index']
  #allocation1 [shape = 'u32[144,128]{1,0:T(1,128)}', space=vmem, size = 0x12000, scoped, tag = 'internal scratch']
  #allocation2 [shape = 'f32[1,1]{1,0:T(1,128)S(1)}', space=vmem, size = 0x200, scoped, tag = 'scoped memory for simple_disc_forward.1']
  %s0 = inlined_call_operand.vmem [shape: f32[2,288], index: 0, kind: input, shape index: {}]
  %s1 = inlined_call_operand.hbm [shape: f32[288,256], index: 1, kind: input, shape index: {}]
  %s2 = inlined_call_operand.vmem [shape: f32[1,256], index: 2, kind: input, shape index: {}]
  %s3 = inlined_call_operand.vmem [shape: f32[256,128], index: 3, kind: input, shape index: {}]
  %s4 = inlined_call_operand.vmem [shape: f32[1,128], index: 4, kind: input, shape index: {}]
  %s5 = inlined_call_operand.vmem [shape: f32[128,64], index: 5, kind: input, shape index: {}]
  %s6 = inlined_call_operand.vmem [shape: f32[1,64], index: 6, kind: input, shape index: {}]
  %s7 = inlined_call_operand.vmem [shape: f32[64,32], index: 7, kind: input, shape index: {}]
  %s8 = inlined_call_operand.vmem [shape: f32[1,32], index: 8, kind: input, shape index: {}]
  %s9 = inlined_call_operand.vmem [shape: f32[32,16], index: 9, kind: input, shape index: {}]
  %s10 = inlined_call_operand.vmem [shape: f32[1,16], index: 10, kind: input, shape index: {}]
  %s11 = inlined_call_operand.vmem [shape: f32[16,1], index: 11, kind: input, shape index: {}]
  %s12 = inlined_call_operand.<no memory space> [shape: f32[1,1], index: 12, kind: input, shape index: {}]
  %s13 = inlined_call_operand.vmem [shape: f32[2,1], index: 13, kind: output, shape index: {}]
  %s14 = sld [smem:[#allocation0]]
  $region66: #{simple_disc_forward.1} parent=0
    _
  %s16 = ssub.s32 1, %s14
  %s17 = scalar_select 0, %s16, %s14
  %v18 = vstv %s12
  %19 = vst [vmem:[#allocation2] sm:$0x1] %v18
  $region1: #{simple_disc_forward.1} parent=0
    #allocation3 [shape = 'u8[294912]{0}', space=vmem, size = 0x48000, scoped, tag = 'input window, operand 1, single buffered']
    #allocation4 [shape = 's32[1]{0}', space=sflag, size = 0x4, scoped, tag = 'scoped memory for simple_disc_forward.1']
    %20 = vsyncpa [#allocation4], 0
    // Predicated region
    $region2: #{simple_disc_forward.1} parent=1 // pred_check
      _
    $region3: #{simple_disc_forward.1} parent=1 // pred_check_branch
      %22 = sbr.rel (0) target = $region5
    $region4: #{simple_disc_forward.1} parent=1 // pred_region
      _
    $region5: #{simple_disc_forward.1} parent=1 // pred_fallthru
      _
    // Predicated region
    $region6: #{simple_disc_forward.1} parent=1 // pred_check
      _
    $region7: #{simple_disc_forward.1} parent=1 // pred_check_branch
      %24 = sbr.rel (0) target = $region9
    $region8: #{simple_disc_forward.1} parent=1 // pred_region
      %s26 = ssub.s32 9216, 9216
      %27 = vsyncadd [#allocation4], %s26
      %s28 = sshll.u32 [#allocation3], 4
      %s29 = int_to_ptr.vmem [resolvable:$true] %s28
      %34 = dma.hbm_to_vmem [thread:$0]  %s1, 9216, %s29, [#allocation4], 256, 256, 16
    $region9: #{simple_disc_forward.1} parent=1 // pred_fallthru
      _
    // Predicated region
    $region10: #{simple_disc_forward.1} parent=1 // pred_check
      _
    $region11: #{simple_disc_forward.1} parent=1 // pred_check_branch
      %36 = sbr.rel (0) target = $region13
    $region12: #{simple_disc_forward.1} parent=1 // pred_region
      _
    $region13: #{simple_disc_forward.1} parent=1 // pred_fallthru
      _
    // Predicated region
    $region14: #{simple_disc_forward.1} parent=1 // pred_check
      _
    $region15: #{simple_disc_forward.1} parent=1 // pred_check_branch
      %38 = sbr.rel (0) target = $region17
    $region16: #{simple_disc_forward.1} parent=1 // pred_region
      _
    $region17: #{simple_disc_forward.1} parent=1 // pred_fallthru
      _
    // Predicated region
    $region18: #{simple_disc_forward.1} parent=1 // pred_check
      _
    $region19: #{simple_disc_forward.1} parent=1 // pred_check_branch
      %40 = sbr.rel (0) target = $region21
    $region20: #{simple_disc_forward.1} parent=1 // pred_region
      _
    $region21: #{simple_disc_forward.1} parent=1 // pred_fallthru
      _
    // Predicated region
    $region22: #{simple_disc_forward.1} parent=1 // pred_check
      _
    $region23: #{simple_disc_forward.1} parent=1 // pred_check_branch
      %42 = sbr.rel (0) target = $region25
    $region24: #{simple_disc_forward.1} parent=1 // pred_region
      _
    $region25: #{simple_disc_forward.1} parent=1 // pred_fallthru
      _
    // Predicated region
    $region26: #{simple_disc_forward.1} parent=1 // pred_check
      _
    $region27: #{simple_disc_forward.1} parent=1 // pred_check_branch
      %44 = sbr.rel (0) target = $region29
    $region28: #{simple_disc_forward.1} parent=1 // pred_region
      _
    $region29: #{simple_disc_forward.1} parent=1 // pred_fallthru
      _
    // Predicated region
    $region30: #{simple_disc_forward.1} parent=1 // pred_check
      _
    $region31: #{simple_disc_forward.1} parent=1 // pred_check_branch
      %46 = sbr.rel (0) target = $region33
    $region32: #{simple_disc_forward.1} parent=1 // pred_region
      _
    $region33: #{simple_disc_forward.1} parent=1 // pred_fallthru
      _
    // Predicated region
    $region34: #{simple_disc_forward.1} parent=1 // pred_check
      _
    $region35: #{simple_disc_forward.1} parent=1 // pred_check_branch
      %48 = sbr.rel (0) target = $region37
    $region36: #{simple_disc_forward.1} parent=1 // pred_region
      _
    $region37: #{simple_disc_forward.1} parent=1 // pred_fallthru
      _
    // Predicated region
    $region38: #{simple_disc_forward.1} parent=1 // pred_check
      _
    $region39: #{simple_disc_forward.1} parent=1 // pred_check_branch
      %50 = sbr.rel (0) target = $region41
    $region40: #{simple_disc_forward.1} parent=1 // pred_region
      _
    $region41: #{simple_disc_forward.1} parent=1 // pred_fallthru
      _
    // Predicated region
    $region42: #{simple_disc_forward.1} parent=1 // pred_check
      _
    $region43: #{simple_disc_forward.1} parent=1 // pred_check_branch
      %52 = sbr.rel (0) target = $region45
    $region44: #{simple_disc_forward.1} parent=1 // pred_region
      _
    $region45: #{simple_disc_forward.1} parent=1 // pred_fallthru
      _
    // Predicated region
    $region46: #{simple_disc_forward.1} parent=1 // pred_check
      _
    $region47: #{simple_disc_forward.1} parent=1 // pred_check_branch
      %54 = sbr.rel (0) target = $region49
    $region48: #{simple_disc_forward.1} parent=1 // pred_region
      _
    $region49: #{simple_disc_forward.1} parent=1 // pred_fallthru
      _
    // Predicated region
    $region50: #{simple_disc_forward.1} parent=1 // pred_check
      _
    $region51: #{simple_disc_forward.1} parent=1 // pred_check_branch
      %56 = sbr.rel (0) target = $region53
    $region52: #{simple_disc_forward.1} parent=1 // pred_region
      _
    $region53: #{simple_disc_forward.1} parent=1 // pred_fallthru
      _
    // Predicated region
    $region54: #{simple_disc_forward.1} parent=1 // pred_check
      _
    $region55: #{simple_disc_forward.1} parent=1 // pred_check_branch
      %58 = sbr.rel (0) target = $region57
    $region56: #{simple_disc_forward.1} parent=1 // pred_region
      %59 = dma.done [#allocation4], 9216
    $region57: #{simple_disc_forward.1} parent=1 // pred_fallthru
      _
    %v60 = vld [vmem:[%s0] sm:$0x3f]
    %v61 = vld [vmem:[#allocation3] sm:$0xff]
    %v62 = vld [vmem:[#allocation3 + $0x8] sm:$0xff]
    %v63 = vld [vmem:[#allocation3 + $0x10] sm:$0xff]
    %v64 = vld [vmem:[#allocation3 + $0x18] sm:$0xff]
    %v65 = vld [vmem:[#allocation3 + $0x20] sm:$0xff]
    %v66 = vld [vmem:[#allocation3 + $0x28] sm:$0xff]
    %v67 = vld [vmem:[#allocation3 + $0x30] sm:$0xff]
    %v68 = vld [vmem:[#allocation3 + $0x38] sm:$0xff]
    %v69 = vld [vmem:[#allocation3 + $0x40] sm:$0xff]
    %v70 = vld [vmem:[#allocation3 + $0x48] sm:$0xff]
    %v71 = vld [vmem:[#allocation3 + $0x50] sm:$0xff]
    %v72 = vld [vmem:[#allocation3 + $0x58] sm:$0xff]
    %v73 = vld [vmem:[#allocation3 + $0x60] sm:$0xff]
    %v74 = vld [vmem:[#allocation3 + $0x68] sm:$0xff]
    %v75 = vld [vmem:[#allocation3 + $0x70] sm:$0xff]
    %v76 = vld [vmem:[#allocation3 + $0x78] sm:$0xff]
    %v77 = vld [vmem:[#allocation3 + $0x80] sm:$0xff]
    %v78 = vld [vmem:[#allocation3 + $0x88] sm:$0xff]
    %v79 = vld [vmem:[#allocation3 + $0x90] sm:$0xff]
    %v80 = vld [vmem:[#allocation3 + $0x98] sm:$0xff]
    %v81 = vld [vmem:[#allocation3 + $0xa0] sm:$0xff]
    %v82 = vld [vmem:[#allocation3 + $0xa8] sm:$0xff]
    %v83 = vld [vmem:[#allocation3 + $0xb0] sm:$0xff]
    %v84 = vld [vmem:[#allocation3 + $0xb8] sm:$0xff]
    %v85 = vld [vmem:[#allocation3 + $0xc0] sm:$0xff]
    %v86 = vld [vmem:[#allocation3 + $0xc8] sm:$0xff]
    %v87 = vld [vmem:[#allocation3 + $0xd0] sm:$0xff]
    %v88 = vld [vmem:[#allocation3 + $0xd8] sm:$0xff]
    %v89 = vld [vmem:[#allocation3 + $0xe0] sm:$0xff]
    %v90 = vld [vmem:[#allocation3 + $0xe8] sm:$0xff]
    %v91 = vld [vmem:[#allocation3 + $0xf0] sm:$0xff]
    %v92 = vld [vmem:[#allocation3 + $0xf8] sm:$0xff]
    %v93 = vld [vmem:[#allocation3 + $0x100] sm:$0xff]
    %v94 = vld [vmem:[#allocation3 + $0x108] sm:$0xff]
    %v95 = vld [vmem:[#allocation3 + $0x110] sm:$0xff]
    %v96 = vld [vmem:[#allocation3 + $0x118] sm:$0xff]
    %v97 = vld [vmem:[#allocation3 + $0x120] sm:$0xff]
    %v98 = vld [vmem:[#allocation3 + $0x128] sm:$0xff]
    %v99 = vld [vmem:[#allocation3 + $0x130] sm:$0xff]
    %v100 = vld [vmem:[#allocation3 + $0x138] sm:$0xff]
    %v101 = vld [vmem:[#allocation3 + $0x140] sm:$0xff]
    %v102 = vld [vmem:[#allocation3 + $0x148] sm:$0xff]
    %v103 = vld [vmem:[#allocation3 + $0x150] sm:$0xff]
    %v104 = vld [vmem:[#allocation3 + $0x158] sm:$0xff]
    %v105 = vld [vmem:[#allocation3 + $0x160] sm:$0xff]
    %v106 = vld [vmem:[#allocation3 + $0x168] sm:$0xff]
    %v107 = vld [vmem:[#allocation3 + $0x170] sm:$0xff]
    %v108 = vld [vmem:[#allocation3 + $0x178] sm:$0xff]
    %v109 = vld [vmem:[#allocation3 + $0x180] sm:$0xff]
    %v110 = vld [vmem:[#allocation3 + $0x188] sm:$0xff]
    %v111 = vld [vmem:[#allocation3 + $0x190] sm:$0xff]
    %v112 = vld [vmem:[#allocation3 + $0x198] sm:$0xff]
    %v113 = vld [vmem:[#allocation3 + $0x1a0] sm:$0xff]
    %v114 = vld [vmem:[#allocation3 + $0x1a8] sm:$0xff]
    %v115 = vld [vmem:[#allocation3 + $0x1b0] sm:$0xff]
    %v116 = vld [vmem:[#allocation3 + $0x1b8] sm:$0xff]
    %v117 = vld [vmem:[#allocation3 + $0x1c0] sm:$0xff]
    %v118 = vld [vmem:[#allocation3 + $0x1c8] sm:$0xff]
    %v119 = vld [vmem:[#allocation3 + $0x1d0] sm:$0xff]
    %v120 = vld [vmem:[#allocation3 + $0x1d8] sm:$0xff]
    %v121 = vld [vmem:[#allocation3 + $0x1e0] sm:$0xff]
    %v122 = vld [vmem:[#allocation3 + $0x1e8] sm:$0xff]
    %v123 = vld [vmem:[#allocation3 + $0x1f0] sm:$0xff]
    %v124 = vld [vmem:[#allocation3 + $0x1f8] sm:$0xff]
    %v125 = vld [vmem:[#allocation3 + $0x200] sm:$0xff]
    %v126 = vld [vmem:[#allocation3 + $0x208] sm:$0xff]
    %v127 = vld [vmem:[#allocation3 + $0x210] sm:$0xff]
    %v128 = vld [vmem:[#allocation3 + $0x218] sm:$0xff]
    %v129 = vld [vmem:[#allocation3 + $0x220] sm:$0xff]
    %v130 = vld [vmem:[#allocation3 + $0x228] sm:$0xff]
    %v131 = vld [vmem:[#allocation3 + $0x230] sm:$0xff]
    %v132 = vld [vmem:[#allocation3 + $0x238] sm:$0xff]
    %v133 = vld [vmem:[%s2] sm:$0x3]
    %v135 = vlaneseq
    %v136 = vshrl.u32 %v135, 7
    %v137 = vsub.s32 0, %v136
    %v138 = vrot.slane %v133, %v137
    %v139 = vlaneseq
    %v140 = vshrl.u32 %v139, 7
    %v141 = vsub.s32 1, %v140
    %v142 = vrot.slane %v133, %v141
    %v146 = vcombine.high %v60, %v60
    %v148 = vunpack.c.l.s4 1983009808
    %v149 = vunpack.c.0.s8 %v148
    %v150 = vlaneseq
    %v151 = vshrl.u32 %v150, 7
    %v152 = vsub.s32 %v149, %v151
    %v153 = vrot.slane %v60, %v152
    %v155 = vunpack.c.l.s4 1983009808
    %v156 = vunpack.c.0.s8 %v155
    %v157 = vlaneseq
    %v158 = vshrl.u32 %v157, 7
    %v159 = vsub.s32 %v156, %v158
    %v160 = vrot.slane %v146, %v159
    %v161 = vcombine.high %v153, %v153
    %vm164 = vcmask 261120
    %v165 = vsel %vm164, %v160, 0
    %167 = vmatprep.subr.mxu0 %v62
    %168 = vmatpush1.msra.mxu0 %v61
    %169 = vmatprep.subr.mxu0 %v64
    %170 = vmatpush1.msra.mxu0 %v63
    %171 = vmatprep.subr.mxu0 %v66
    %172 = vmatpush1.msra.mxu0 %v65
    %173 = vmatprep.subr.mxu0 %v68
    %174 = vmatpush1.msra.mxu0 %v67
    %175 = vmatprep.subr.mxu0 %v70
    %176 = vmatpush1.msra.mxu0 %v69
    %177 = vmatprep.subr.mxu0 %v72
    %178 = vmatpush1.msra.mxu0 %v71
    %179 = vmatprep.subr.mxu0 %v74
    %180 = vmatpush1.msra.mxu0 %v73
    %181 = vmatprep.subr.mxu0 %v76
    %182 = vmatpush1.msra.mxu0 %v75
    %183 = vmatprep.subr.mxu0 %v78
    %184 = vmatpush1.msra.mxu0 %v77
    %185 = vmatprep.subr.mxu0 %v80
    %186 = vmatpush1.msra.mxu0 %v79
    %187 = vmatprep.subr.mxu0 %v82
    %188 = vmatpush1.msra.mxu0 %v81
    %189 = vmatprep.subr.mxu0 %v84
    %190 = vmatpush1.msra.mxu0 %v83
    %191 = vmatprep.subr.mxu0 %v86
    %192 = vmatpush1.msra.mxu0 %v85
    %193 = vmatprep.subr.mxu0 %v88
    %194 = vmatpush1.msra.mxu0 %v87
    %195 = vmatprep.subr.mxu0 %v90
    %196 = vmatpush1.msra.mxu0 %v89
    %197 = vmatprep.subr.mxu0 %v92
    %198 = vmatpush1.msra.mxu0 %v91
    %199 = vmatprep.subr.mxu0 %v94
    %200 = vmatpush1.msra.mxu0 %v93
    %201 = vmatprep.subr.mxu0 %v96
    %202 = vmatpush1.msra.mxu0 %v95
    %203 = vmatprep.subr.mxu0 %v98
    %204 = vmatpush1.msra.mxu0 %v97
    %205 = vmatprep.subr.mxu0 %v100
    %206 = vmatpush1.msra.mxu0 %v99
    %207 = vmatprep.subr.mxu0 %v102
    %208 = vmatpush1.msra.mxu0 %v101
    %209 = vmatprep.subr.mxu0 %v104
    %210 = vmatpush1.msra.mxu0 %v103
    %211 = vmatprep.subr.mxu0 %v106
    %212 = vmatpush1.msra.mxu0 %v105
    %213 = vmatprep.subr.mxu0 %v108
    %214 = vmatpush1.msra.mxu0 %v107
    %215 = vmatprep.subr.mxu0 %v110
    %216 = vmatpush1.msra.mxu0 %v109
    %217 = vmatprep.subr.mxu0 %v112
    %218 = vmatpush1.msra.mxu0 %v111
    %219 = vmatprep.subr.mxu0 %v114
    %220 = vmatpush1.msra.mxu0 %v113
    %221 = vmatprep.subr.mxu0 %v116
    %222 = vmatpush1.msra.mxu0 %v115
    %223 = vmatprep.subr.mxu0 %v118
    %224 = vmatpush1.msra.mxu0 %v117
    %225 = vmatprep.subr.mxu0 %v120
    %226 = vmatpush1.msra.mxu0 %v119
    %227 = vmatprep.subr.mxu0 %v122
    %228 = vmatpush1.msra.mxu0 %v121
    %229 = vmatprep.subr.mxu0 %v124
    %230 = vmatpush1.msra.mxu0 %v123
    %231 = vmatprep.mubr.f32.mxu0 %v161
    %232 = vmatmul.mubr.f32.gmra.mrb[0].mxu0 %v153
    %v233 = vpop.f32.mrb[0].mxu0
    %v234 = vadd.f32 %v138, %v233
    %v235 = vpop.f32.mrb[0].mxu0
    %v236 = vadd.f32 %v142, %v235
    %237 = vdwg.mxu0
    %238 = vmatprep.subr.mxu0 %v126
    %239 = vmatpush1.msra.mxu0 %v125
    %240 = vmatprep.subr.mxu0 %v128
    %241 = vmatpush1.msra.mxu0 %v127
    %242 = vmatprep.subr.mxu0 %v130
    %243 = vmatpush1.msra.mxu0 %v129
    %244 = vmatprep.subr.mxu0 %v132
    %245 = vmatpush1.msra.mxu0 %v131
    %246 = vmatprep.subr.mxu0 0.0
    %247 = vmatpush1.msra.mxu0 0.0
    %248 = vmatprep.subr.mxu0 0.0
    %249 = vmatpush1.msra.mxu0 0.0
    %250 = vmatprep.subr.mxu0 0.0
    %251 = vmatpush1.msra.mxu0 0.0
    %252 = vmatprep.subr.mxu0 0.0
    %253 = vmatpush1.msra.mxu0 0.0
    %254 = vmatprep.subr.mxu0 0.0
    %255 = vmatpush1.msra.mxu0 0.0
    %256 = vmatprep.subr.mxu0 0.0
    %257 = vmatpush1.msra.mxu0 0.0
    %258 = vmatprep.subr.mxu0 0.0
    %259 = vmatpush1.msra.mxu0 0.0
    %260 = vmatprep.subr.mxu0 0.0
    %261 = vmatpush1.msra.mxu0 0.0
    %262 = vmatprep.subr.mxu0 0.0
    %263 = vmatpush1.msra.mxu0 0.0
    %264 = vmatprep.subr.mxu0 0.0
    %265 = vmatpush1.msra.mxu0 0.0
    %266 = vmatprep.subr.mxu0 0.0
    %267 = vmatpush1.msra.mxu0 0.0
    %268 = vmatprep.subr.mxu0 0.0
    %269 = vmatpush1.msra.mxu0 0.0
    %270 = vmatprep.subr.mxu0 0.0
    %271 = vmatpush1.msra.mxu0 0.0
    %272 = vmatprep.subr.mxu0 0.0
    %273 = vmatpush1.msra.mxu0 0.0
    %274 = vmatprep.subr.mxu0 0.0
    %275 = vmatpush1.msra.mxu0 0.0
    %276 = vmatprep.subr.mxu0 0.0
    %277 = vmatpush1.msra.mxu0 0.0
    %278 = vmatprep.subr.mxu0 0.0
    %279 = vmatpush1.msra.mxu0 0.0
    %280 = vmatprep.subr.mxu0 0.0
    %281 = vmatpush1.msra.mxu0 0.0
    %282 = vmatprep.subr.mxu0 0.0
    %283 = vmatpush1.msra.mxu0 0.0
    %284 = vmatprep.subr.mxu0 0.0
    %285 = vmatpush1.msra.mxu0 0.0
    %286 = vmatprep.subr.mxu0 0.0
    %287 = vmatpush1.msra.mxu0 0.0
    %288 = vmatprep.subr.mxu0 0.0
    %289 = vmatpush1.msra.mxu0 0.0
    %290 = vmatprep.subr.mxu0 0.0
    %291 = vmatpush1.msra.mxu0 0.0
    %292 = vmatprep.subr.mxu0 0.0
    %293 = vmatpush1.msra.mxu0 0.0
    %294 = vmatprep.subr.mxu0 0.0
    %295 = vmatpush1.msra.mxu0 0.0
    %296 = vmatprep.subr.mxu0 0.0
    %297 = vmatpush1.msra.mxu0 0.0
    %298 = vmatprep.subr.mxu0 0.0
    %299 = vmatpush1.msra.mxu0 0.0
    %300 = vmatprep.subr.mxu0 0.0
    %301 = vmatpush1.msra.mxu0 0.0
    %302 = vmatprep.mubr.f32.mxu0 0.0
    %303 = vmatmul.mubr.f32.gmra.mrb[0].mxu0 %v165
    %v304 = vpop.f32.mrb[0].mxu0
    %v305 = vadd.f32 %v234, %v304
    %v306 = vpop.f32.mrb[0].mxu0
    %v307 = vadd.f32 %v236, %v306
    %308 = vdwg.mxu0
    %v309 = vmax.f32 %v305, 0.0
    %v310 = vmax.f32 %v307, 0.0
    %v311 = vld [vmem:[%s3] sm:$0xff]
    %v312 = vld [vmem:[%s3 + $0x8] sm:$0xff]
    %v313 = vld [vmem:[%s3 + $0x10] sm:$0xff]
    %v314 = vld [vmem:[%s3 + $0x18] sm:$0xff]
    %v315 = vld [vmem:[%s3 + $0x20] sm:$0xff]
    %v316 = vld [vmem:[%s3 + $0x28] sm:$0xff]
    %v317 = vld [vmem:[%s3 + $0x30] sm:$0xff]
    %v318 = vld [vmem:[%s3 + $0x38] sm:$0xff]
    %v319 = vld [vmem:[%s3 + $0x40] sm:$0xff]
    %v320 = vld [vmem:[%s3 + $0x48] sm:$0xff]
    %v321 = vld [vmem:[%s3 + $0x50] sm:$0xff]
    %v322 = vld [vmem:[%s3 + $0x58] sm:$0xff]
    %v323 = vld [vmem:[%s3 + $0x60] sm:$0xff]
    %v324 = vld [vmem:[%s3 + $0x68] sm:$0xff]
    %v325 = vld [vmem:[%s3 + $0x70] sm:$0xff]
    %v326 = vld [vmem:[%s3 + $0x78] sm:$0xff]
    %v327 = vld [vmem:[%s3 + $0x80] sm:$0xff]
    %v328 = vld [vmem:[%s3 + $0x88] sm:$0xff]
    %v329 = vld [vmem:[%s3 + $0x90] sm:$0xff]
    %v330 = vld [vmem:[%s3 + $0x98] sm:$0xff]
    %v331 = vld [vmem:[%s3 + $0xa0] sm:$0xff]
    %v332 = vld [vmem:[%s3 + $0xa8] sm:$0xff]
    %v333 = vld [vmem:[%s3 + $0xb0] sm:$0xff]
    %v334 = vld [vmem:[%s3 + $0xb8] sm:$0xff]
    %v335 = vld [vmem:[%s3 + $0xc0] sm:$0xff]
    %v336 = vld [vmem:[%s3 + $0xc8] sm:$0xff]
    %v337 = vld [vmem:[%s3 + $0xd0] sm:$0xff]
    %v338 = vld [vmem:[%s3 + $0xd8] sm:$0xff]
    %v339 = vld [vmem:[%s3 + $0xe0] sm:$0xff]
    %v340 = vld [vmem:[%s3 + $0xe8] sm:$0xff]
    %v341 = vld [vmem:[%s3 + $0xf0] sm:$0xff]
    %v342 = vld [vmem:[%s3 + $0xf8] sm:$0xff]
    %v343 = vld [vmem:[%s4] sm:$0x1]
    %v345 = vlaneseq
    %v346 = vshrl.u32 %v345, 7
    %v347 = vsub.s32 0, %v346
    %v348 = vrot.slane %v343, %v347
    %350 = vmatprep.subr.mxu0 0.0
    %351 = vmatpush1.msra.mxu0 %v311
    %352 = vmatprep.subr.mxu0 0.0
    %353 = vmatpush1.msra.mxu0 %v312
    %354 = vmatprep.subr.mxu0 0.0
    %355 = vmatpush1.msra.mxu0 %v313
    %356 = vmatprep.subr.mxu0 0.0
    %357 = vmatpush1.msra.mxu0 %v314
    %358 = vmatprep.subr.mxu0 0.0
    %359 = vmatpush1.msra.mxu0 %v315
    %360 = vmatprep.subr.mxu0 0.0
    %361 = vmatpush1.msra.mxu0 %v316
    %362 = vmatprep.subr.mxu0 0.0
    %363 = vmatpush1.msra.mxu0 %v317
    %364 = vmatprep.subr.mxu0 0.0
    %365 = vmatpush1.msra.mxu0 %v318
    %366 = vmatprep.subr.mxu0 0.0
    %367 = vmatpush1.msra.mxu0 %v319
    %368 = vmatprep.subr.mxu0 0.0
    %369 = vmatpush1.msra.mxu0 %v320
    %370 = vmatprep.subr.mxu0 0.0
    %371 = vmatpush1.msra.mxu0 %v321
    %372 = vmatprep.subr.mxu0 0.0
    %373 = vmatpush1.msra.mxu0 %v322
    %374 = vmatprep.subr.mxu0 0.0
    %375 = vmatpush1.msra.mxu0 %v323
    %376 = vmatprep.subr.mxu0 0.0
    %377 = vmatpush1.msra.mxu0 %v324
    %378 = vmatprep.subr.mxu0 0.0
    %379 = vmatpush1.msra.mxu0 %v325
    %380 = vmatprep.subr.mxu0 0.0
    %381 = vmatpush1.msra.mxu0 %v326
    %382 = vmatprep.subr.mxu0 0.0
    %383 = vmatpush1.msra.mxu0 %v327
    %384 = vmatprep.subr.mxu0 0.0
    %385 = vmatpush1.msra.mxu0 %v328
    %386 = vmatprep.subr.mxu0 0.0
    %387 = vmatpush1.msra.mxu0 %v329
    %388 = vmatprep.subr.mxu0 0.0
    %389 = vmatpush1.msra.mxu0 %v330
    %390 = vmatprep.subr.mxu0 0.0
    %391 = vmatpush1.msra.mxu0 %v331
    %392 = vmatprep.subr.mxu0 0.0
    %393 = vmatpush1.msra.mxu0 %v332
    %394 = vmatprep.subr.mxu0 0.0
    %395 = vmatpush1.msra.mxu0 %v333
    %396 = vmatprep.subr.mxu0 0.0
    %397 = vmatpush1.msra.mxu0 %v334
    %398 = vmatprep.subr.mxu0 0.0
    %399 = vmatpush1.msra.mxu0 %v335
    %400 = vmatprep.subr.mxu0 0.0
    %401 = vmatpush1.msra.mxu0 %v336
    %402 = vmatprep.subr.mxu0 0.0
    %403 = vmatpush1.msra.mxu0 %v337
    %404 = vmatprep.subr.mxu0 0.0
    %405 = vmatpush1.msra.mxu0 %v338
    %406 = vmatprep.subr.mxu0 0.0
    %407 = vmatpush1.msra.mxu0 %v339
    %408 = vmatprep.subr.mxu0 0.0
    %409 = vmatpush1.msra.mxu0 %v340
    %410 = vmatprep.subr.mxu0 0.0
    %411 = vmatpush1.msra.mxu0 %v341
    %412 = vmatprep.subr.mxu0 0.0
    %413 = vmatpush1.msra.mxu0 %v342
    %414 = vmatprep.mubr.f32.mxu0 %v310
    %415 = vmatmul.mubr.f32.gmra.mrb[0].mxu0 %v309
    %v416 = vpop.f32.mrb[0].mxu0
    %v417 = vadd.f32 %v348, %v416
    %v418 = vpop.f32.mrb[0].mxu0
    %419 = vdwg.mxu0
    %v420 = vmax.f32 %v417, 0.0
    %v421 = vld [vmem:[%s5] sm:$0xff]
    %v422 = vld [vmem:[%s5 + $0x8] sm:$0xff]
    %v423 = vld [vmem:[%s5 + $0x10] sm:$0xff]
    %v424 = vld [vmem:[%s5 + $0x18] sm:$0xff]
    %v425 = vld [vmem:[%s5 + $0x20] sm:$0xff]
    %v426 = vld [vmem:[%s5 + $0x28] sm:$0xff]
    %v427 = vld [vmem:[%s5 + $0x30] sm:$0xff]
    %v428 = vld [vmem:[%s5 + $0x38] sm:$0xff]
    %v429 = vld [vmem:[%s5 + $0x40] sm:$0xff]
    %v430 = vld [vmem:[%s5 + $0x48] sm:$0xff]
    %v431 = vld [vmem:[%s5 + $0x50] sm:$0xff]
    %v432 = vld [vmem:[%s5 + $0x58] sm:$0xff]
    %v433 = vld [vmem:[%s5 + $0x60] sm:$0xff]
    %v434 = vld [vmem:[%s5 + $0x68] sm:$0xff]
    %v435 = vld [vmem:[%s5 + $0x70] sm:$0xff]
    %v436 = vld [vmem:[%s5 + $0x78] sm:$0xff]
    %v437 = vld [vmem:[%s6] sm:$0x1]
    %v439 = vlaneseq
    %v440 = vshrl.u32 %v439, 7
    %v441 = vsub.s32 0, %v440
    %v442 = vrot.slane %v437, %v441
    %444 = vmatprep.subr.mxu0 0.0
    %445 = vmatpush1.msra.mxu0 %v421
    %446 = vmatprep.subr.mxu0 0.0
    %447 = vmatpush1.msra.mxu0 %v422
    %448 = vmatprep.subr.mxu0 0.0
    %449 = vmatpush1.msra.mxu0 %v423
    %450 = vmatprep.subr.mxu0 0.0
    %451 = vmatpush1.msra.mxu0 %v424
    %452 = vmatprep.subr.mxu0 0.0
    %453 = vmatpush1.msra.mxu0 %v425
    %454 = vmatprep.subr.mxu0 0.0
    %455 = vmatpush1.msra.mxu0 %v426
    %456 = vmatprep.subr.mxu0 0.0
    %457 = vmatpush1.msra.mxu0 %v427
    %458 = vmatprep.subr.mxu0 0.0
    %459 = vmatpush1.msra.mxu0 %v428
    %460 = vmatprep.subr.mxu0 0.0
    %461 = vmatpush1.msra.mxu0 %v429
    %462 = vmatprep.subr.mxu0 0.0
    %463 = vmatpush1.msra.mxu0 %v430
    %464 = vmatprep.subr.mxu0 0.0
    %465 = vmatpush1.msra.mxu0 %v431
    %466 = vmatprep.subr.mxu0 0.0
    %467 = vmatpush1.msra.mxu0 %v432
    %468 = vmatprep.subr.mxu0 0.0
    %469 = vmatpush1.msra.mxu0 %v433
    %470 = vmatprep.subr.mxu0 0.0
    %471 = vmatpush1.msra.mxu0 %v434
    %472 = vmatprep.subr.mxu0 0.0
    %473 = vmatpush1.msra.mxu0 %v435
    %474 = vmatprep.subr.mxu0 0.0
    %475 = vmatpush1.msra.mxu0 %v436
    %476 = vmatprep.subr.mxu0 0.0
    %477 = vmatpush1.msra.mxu0 0.0
    %478 = vmatprep.subr.mxu0 0.0
    %479 = vmatpush1.msra.mxu0 0.0
    %480 = vmatprep.subr.mxu0 0.0
    %481 = vmatpush1.msra.mxu0 0.0
    %482 = vmatprep.subr.mxu0 0.0
    %483 = vmatpush1.msra.mxu0 0.0
    %484 = vmatprep.subr.mxu0 0.0
    %485 = vmatpush1.msra.mxu0 0.0
    %486 = vmatprep.subr.mxu0 0.0
    %487 = vmatpush1.msra.mxu0 0.0
    %488 = vmatprep.subr.mxu0 0.0
    %489 = vmatpush1.msra.mxu0 0.0
    %490 = vmatprep.subr.mxu0 0.0
    %491 = vmatpush1.msra.mxu0 0.0
    %492 = vmatprep.subr.mxu0 0.0
    %493 = vmatpush1.msra.mxu0 0.0
    %494 = vmatprep.subr.mxu0 0.0
    %495 = vmatpush1.msra.mxu0 0.0
    %496 = vmatprep.subr.mxu0 0.0
    %497 = vmatpush1.msra.mxu0 0.0
    %498 = vmatprep.subr.mxu0 0.0
    %499 = vmatpush1.msra.mxu0 0.0
    %500 = vmatprep.subr.mxu0 0.0
    %501 = vmatpush1.msra.mxu0 0.0
    %502 = vmatprep.subr.mxu0 0.0
    %503 = vmatpush1.msra.mxu0 0.0
    %504 = vmatprep.subr.mxu0 0.0
    %505 = vmatpush1.msra.mxu0 0.0
    %506 = vmatprep.subr.mxu0 0.0
    %507 = vmatpush1.msra.mxu0 0.0
    %508 = vmatprep.mubr.f32.mxu0 0.0
    %509 = vmatmul.mubr.f32.gmra.mrb[0].mxu0 %v420
    %v510 = vpop.f32.mrb[0].mxu0
    %v511 = vadd.f32 %v442, %v510
    %v512 = vpop.f32.mrb[0].mxu0
    %513 = vdwg.mxu0
    %v514 = vmax.f32 %v511, 0.0
    %v515 = vld [vmem:[%s7] sm:$0xff]
    %v516 = vld [vmem:[%s7 + $0x8] sm:$0xff]
    %v517 = vld [vmem:[%s7 + $0x10] sm:$0xff]
    %v518 = vld [vmem:[%s7 + $0x18] sm:$0xff]
    %v519 = vld [vmem:[%s7 + $0x20] sm:$0xff]
    %v520 = vld [vmem:[%s7 + $0x28] sm:$0xff]
    %v521 = vld [vmem:[%s7 + $0x30] sm:$0xff]
    %v522 = vld [vmem:[%s7 + $0x38] sm:$0xff]
    %v523 = vld [vmem:[%s8] sm:$0x1]
    %v525 = vlaneseq
    %v526 = vshrl.u32 %v525, 7
    %v527 = vsub.s32 0, %v526
    %v528 = vrot.slane %v523, %v527
    %vm530 = vcmask 523264
    %v532 = vsel %vm530, %v514, 0
    %534 = vmatprep.subr.mxu0 0.0
    %535 = vmatpush1.msra.mxu0 %v515
    %536 = vmatprep.subr.mxu0 0.0
    %537 = vmatpush1.msra.mxu0 %v516
    %538 = vmatprep.subr.mxu0 0.0
    %539 = vmatpush1.msra.mxu0 %v517
    %540 = vmatprep.subr.mxu0 0.0
    %541 = vmatpush1.msra.mxu0 %v518
    %542 = vmatprep.subr.mxu0 0.0
    %543 = vmatpush1.msra.mxu0 %v519
    %544 = vmatprep.subr.mxu0 0.0
    %545 = vmatpush1.msra.mxu0 %v520
    %546 = vmatprep.subr.mxu0 0.0
    %547 = vmatpush1.msra.mxu0 %v521
    %548 = vmatprep.subr.mxu0 0.0
    %549 = vmatpush1.msra.mxu0 %v522
    %550 = vmatprep.subr.mxu0 0.0
    %551 = vmatpush1.msra.mxu0 0.0
    %552 = vmatprep.subr.mxu0 0.0
    %553 = vmatpush1.msra.mxu0 0.0
    %554 = vmatprep.subr.mxu0 0.0
    %555 = vmatpush1.msra.mxu0 0.0
    %556 = vmatprep.subr.mxu0 0.0
    %557 = vmatpush1.msra.mxu0 0.0
    %558 = vmatprep.subr.mxu0 0.0
    %559 = vmatpush1.msra.mxu0 0.0
    %560 = vmatprep.subr.mxu0 0.0
    %561 = vmatpush1.msra.mxu0 0.0
    %562 = vmatprep.subr.mxu0 0.0
    %563 = vmatpush1.msra.mxu0 0.0
    %564 = vmatprep.subr.mxu0 0.0
    %565 = vmatpush1.msra.mxu0 0.0
    %566 = vmatprep.subr.mxu0 0.0
    %567 = vmatpush1.msra.mxu0 0.0
    %568 = vmatprep.subr.mxu0 0.0
    %569 = vmatpush1.msra.mxu0 0.0
    %570 = vmatprep.subr.mxu0 0.0
    %571 = vmatpush1.msra.mxu0 0.0
    %572 = vmatprep.subr.mxu0 0.0
    %573 = vmatpush1.msra.mxu0 0.0
    %574 = vmatprep.subr.mxu0 0.0
    %575 = vmatpush1.msra.mxu0 0.0
    %576 = vmatprep.subr.mxu0 0.0
    %577 = vmatpush1.msra.mxu0 0.0
    %578 = vmatprep.subr.mxu0 0.0
    %579 = vmatpush1.msra.mxu0 0.0
    %580 = vmatprep.subr.mxu0 0.0
    %581 = vmatpush1.msra.mxu0 0.0
    %582 = vmatprep.subr.mxu0 0.0
    %583 = vmatpush1.msra.mxu0 0.0
    %584 = vmatprep.subr.mxu0 0.0
    %585 = vmatpush1.msra.mxu0 0.0
    %586 = vmatprep.subr.mxu0 0.0
    %587 = vmatpush1.msra.mxu0 0.0
    %588 = vmatprep.subr.mxu0 0.0
    %589 = vmatpush1.msra.mxu0 0.0
    %590 = vmatprep.subr.mxu0 0.0
    %591 = vmatpush1.msra.mxu0 0.0
    %592 = vmatprep.subr.mxu0 0.0
    %593 = vmatpush1.msra.mxu0 0.0
    %594 = vmatprep.subr.mxu0 0.0
    %595 = vmatpush1.msra.mxu0 0.0
    %596 = vmatprep.subr.mxu0 0.0
    %597 = vmatpush1.msra.mxu0 0.0
    %598 = vmatprep.mubr.f32.mxu0 0.0
    %599 = vmatmul.mubr.f32.gmra.mrb[0].mxu0 %v532
    %v600 = vpop.f32.mrb[0].mxu0
    %v601 = vadd.f32 %v528, %v600
    %v602 = vpop.f32.mrb[0].mxu0
    %603 = vdwg.mxu0
    %v604 = vmax.f32 %v601, 0.0
    %v605 = vld [vmem:[%s9] sm:$0xff]
    %v606 = vld [vmem:[%s9 + $0x8] sm:$0xff]
    %v607 = vld [vmem:[%s9 + $0x10] sm:$0xff]
    %v608 = vld [vmem:[%s9 + $0x18] sm:$0xff]
    %v609 = vld [vmem:[%s10] sm:$0x1]
    %v611 = vlaneseq
    %v612 = vshrl.u32 %v611, 7
    %v613 = vsub.s32 0, %v612
    %v614 = vrot.slane %v609, %v613
    %v617 = vsel %vm164, %v604, 0
    %619 = vmatprep.subr.mxu0 0.0
    %620 = vmatpush1.msra.mxu0 %v605
    %621 = vmatprep.subr.mxu0 0.0
    %622 = vmatpush1.msra.mxu0 %v606
    %623 = vmatprep.subr.mxu0 0.0
    %624 = vmatpush1.msra.mxu0 %v607
    %625 = vmatprep.subr.mxu0 0.0
    %626 = vmatpush1.msra.mxu0 %v608
    %627 = vmatprep.subr.mxu0 0.0
    %628 = vmatpush1.msra.mxu0 0.0
    %629 = vmatprep.subr.mxu0 0.0
    %630 = vmatpush1.msra.mxu0 0.0
    %631 = vmatprep.subr.mxu0 0.0
    %632 = vmatpush1.msra.mxu0 0.0
    %633 = vmatprep.subr.mxu0 0.0
    %634 = vmatpush1.msra.mxu0 0.0
    %635 = vmatprep.subr.mxu0 0.0
    %636 = vmatpush1.msra.mxu0 0.0
    %637 = vmatprep.subr.mxu0 0.0
    %638 = vmatpush1.msra.mxu0 0.0
    %639 = vmatprep.subr.mxu0 0.0
    %640 = vmatpush1.msra.mxu0 0.0
    %641 = vmatprep.subr.mxu0 0.0
    %642 = vmatpush1.msra.mxu0 0.0
    %643 = vmatprep.subr.mxu0 0.0
    %644 = vmatpush1.msra.mxu0 0.0
    %645 = vmatprep.subr.mxu0 0.0
    %646 = vmatpush1.msra.mxu0 0.0
    %647 = vmatprep.subr.mxu0 0.0
    %648 = vmatpush1.msra.mxu0 0.0
    %649 = vmatprep.subr.mxu0 0.0
    %650 = vmatpush1.msra.mxu0 0.0
    %651 = vmatprep.subr.mxu0 0.0
    %652 = vmatpush1.msra.mxu0 0.0
    %653 = vmatprep.subr.mxu0 0.0
    %654 = vmatpush1.msra.mxu0 0.0
    %655 = vmatprep.subr.mxu0 0.0
    %656 = vmatpush1.msra.mxu0 0.0
    %657 = vmatprep.subr.mxu0 0.0
    %658 = vmatpush1.msra.mxu0 0.0
    %659 = vmatprep.subr.mxu0 0.0
    %660 = vmatpush1.msra.mxu0 0.0
    %661 = vmatprep.subr.mxu0 0.0
    %662 = vmatpush1.msra.mxu0 0.0
    %663 = vmatprep.subr.mxu0 0.0
    %664 = vmatpush1.msra.mxu0 0.0
    %665 = vmatprep.subr.mxu0 0.0
    %666 = vmatpush1.msra.mxu0 0.0
    %667 = vmatprep.subr.mxu0 0.0
    %668 = vmatpush1.msra.mxu0 0.0
    %669 = vmatprep.subr.mxu0 0.0
    %670 = vmatpush1.msra.mxu0 0.0
    %671 = vmatprep.subr.mxu0 0.0
    %672 = vmatpush1.msra.mxu0 0.0
    %673 = vmatprep.subr.mxu0 0.0
    %674 = vmatpush1.msra.mxu0 0.0
    %675 = vmatprep.subr.mxu0 0.0
    %676 = vmatpush1.msra.mxu0 0.0
    %677 = vmatprep.subr.mxu0 0.0
    %678 = vmatpush1.msra.mxu0 0.0
    %679 = vmatprep.subr.mxu0 0.0
    %680 = vmatpush1.msra.mxu0 0.0
    %681 = vmatprep.subr.mxu0 0.0
    %682 = vmatpush1.msra.mxu0 0.0
    %683 = vmatprep.mubr.f32.mxu0 0.0
    %684 = vmatmul.mubr.f32.gmra.mrb[0].mxu0 %v617
    %v685 = vpop.f32.mrb[0].mxu0
    %v686 = vadd.f32 %v614, %v685
    %v687 = vpop.f32.mrb[0].mxu0
    %688 = vdwg.mxu0
    %v689 = vmax.f32 %v686, 0.0
    %v690 = vld [vmem:[%s11] sm:$0xff]
    %v691 = vld [vmem:[%s11 + $0x8] sm:$0xff]
    %v692 = vld [vmem:[#allocation2] sm:$0x1]
    %v694 = vlaneseq
    %v695 = vshrl.u32 %v694, 7
    %v696 = vsub.s32 0, %v695
    %v697 = vrot.slane %v692, %v696
    %vm699 = vcmask 130048
    %v701 = vsel %vm699, %v689, 0
    %703 = vmatprep.subr.mxu0 0.0
    %704 = vmatpush1.msra.mxu0 %v690
    %705 = vmatprep.subr.mxu0 0.0
    %706 = vmatpush1.msra.mxu0 %v691
    %707 = vmatprep.subr.mxu0 0.0
    %708 = vmatpush1.msra.mxu0 0.0
    %709 = vmatprep.subr.mxu0 0.0
    %710 = vmatpush1.msra.mxu0 0.0
    %711 = vmatprep.subr.mxu0 0.0
    %712 = vmatpush1.msra.mxu0 0.0
    %713 = vmatprep.subr.mxu0 0.0
    %714 = vmatpush1.msra.mxu0 0.0
    %715 = vmatprep.subr.mxu0 0.0
    %716 = vmatpush1.msra.mxu0 0.0
    %717 = vmatprep.subr.mxu0 0.0
    %718 = vmatpush1.msra.mxu0 0.0
    %719 = vmatprep.subr.mxu0 0.0
    %720 = vmatpush1.msra.mxu0 0.0
    %721 = vmatprep.subr.mxu0 0.0
    %722 = vmatpush1.msra.mxu0 0.0
    %723 = vmatprep.subr.mxu0 0.0
    %724 = vmatpush1.msra.mxu0 0.0
    %725 = vmatprep.subr.mxu0 0.0
    %726 = vmatpush1.msra.mxu0 0.0
    %727 = vmatprep.subr.mxu0 0.0
    %728 = vmatpush1.msra.mxu0 0.0
    %729 = vmatprep.subr.mxu0 0.0
    %730 = vmatpush1.msra.mxu0 0.0
    %731 = vmatprep.subr.mxu0 0.0
    %732 = vmatpush1.msra.mxu0 0.0
    %733 = vmatprep.subr.mxu0 0.0
    %734 = vmatpush1.msra.mxu0 0.0
    %735 = vmatprep.subr.mxu0 0.0
    %736 = vmatpush1.msra.mxu0 0.0
    %737 = vmatprep.subr.mxu0 0.0
    %738 = vmatpush1.msra.mxu0 0.0
    %739 = vmatprep.subr.mxu0 0.0
    %740 = vmatpush1.msra.mxu0 0.0
    %741 = vmatprep.subr.mxu0 0.0
    %742 = vmatpush1.msra.mxu0 0.0
    %743 = vmatprep.subr.mxu0 0.0
    %744 = vmatpush1.msra.mxu0 0.0
    %745 = vmatprep.subr.mxu0 0.0
    %746 = vmatpush1.msra.mxu0 0.0
    %747 = vmatprep.subr.mxu0 0.0
    %748 = vmatpush1.msra.mxu0 0.0
    %749 = vmatprep.subr.mxu0 0.0
    %750 = vmatpush1.msra.mxu0 0.0
    %751 = vmatprep.subr.mxu0 0.0
    %752 = vmatpush1.msra.mxu0 0.0
    %753 = vmatprep.subr.mxu0 0.0
    %754 = vmatpush1.msra.mxu0 0.0
    %755 = vmatprep.subr.mxu0 0.0
    %756 = vmatpush1.msra.mxu0 0.0
    %757 = vmatprep.subr.mxu0 0.0
    %758 = vmatpush1.msra.mxu0 0.0
    %759 = vmatprep.subr.mxu0 0.0
    %760 = vmatpush1.msra.mxu0 0.0
    %761 = vmatprep.subr.mxu0 0.0
    %762 = vmatpush1.msra.mxu0 0.0
    %763 = vmatprep.subr.mxu0 0.0
    %764 = vmatpush1.msra.mxu0 0.0
    %765 = vmatprep.subr.mxu0 0.0
    %766 = vmatpush1.msra.mxu0 0.0
    %767 = vmatprep.mubr.f32.mxu0 0.0
    %768 = vmatmul.mubr.f32.gmra.mrb[0].mxu0 %v701
    %v769 = vpop.f32.mrb[0].mxu0
    %v770 = vadd.f32 %v697, %v769
    %v771 = vpop.f32.mrb[0].mxu0
    %772 = vdwg.mxu0
    %vm773 = vcmask 1024
    %774 = vst.msk [vmem:[%s13] sm:$0x3] %vm773, %v770
    // Predicated region
    $region58: #{simple_disc_forward.1} parent=1 // pred_check
      _
    $region59: #{simple_disc_forward.1} parent=1 // pred_check_branch
      %776 = sbr.rel (0) target = $region61
    $region60: #{simple_disc_forward.1} parent=1 // pred_region
      _
    $region61: #{simple_disc_forward.1} parent=1 // pred_fallthru
      _
    // Predicated region
    $region62: #{simple_disc_forward.1} parent=1 // pred_check
      _
    $region63: #{simple_disc_forward.1} parent=1 // pred_check_branch
      %778 = sbr.rel (0) target = $region65
    $region64: #{simple_disc_forward.1} parent=1 // pred_region
      _
    $region65: #{simple_disc_forward.1} parent=1 // pred_fallthru
      _
    %779 = vsyncpa [#allocation4], 1

</llo_original>
